<compile_context>
chip_gen: v5e
topology: v5e:2x2
jax: 0.10.0
libtpu: 0.0.40
codegen_flags: <defaults>
</compile_context>

<pallas_src>
import functools
import math

import jax
import jax.numpy as jnp
from jax.experimental import pallas as pl
from jax.experimental.pallas import tpu as pltpu

LANE = 128      # TPU lane width (last-dim tiling)
SUBLANE = 8     # f32 sublane count (second-to-last-dim tiling)


def _round_up(n: int, m: int) -> int:
    return ((n + m - 1) // m) * m


# --------------------------------------------------------------------------
# Kernel
# --------------------------------------------------------------------------
def gru_fused_kernel(xh_ref, w_ref, b_ref, out_ref, *, in_p, h_p):
    """One fused GRU step on a (TILE_B, Kp) tile of concatenated [x | h]."""
    xh = xh_ref[...]                                   # (TILE_B, Kp) f32
    h_prev = xh[:, in_p:in_p + h_p]                    # previous hidden, f32

    # Single MXU matmul: (TILE_B, Kp) @ (Kp, 3*Hp) -> (TILE_B, 3*Hp), f32 acc.
    pre = jnp.dot(xh.astype(w_ref.dtype), w_ref[...],
                  preferred_element_type=jnp.float32) + b_ref[...]

    z = jax.nn.sigmoid(pre[:, 0 * h_p:1 * h_p])        # update gate
    r = jax.nn.sigmoid(pre[:, 1 * h_p:2 * h_p])        # reset gate
    # NOTE: matches the reference module exactly — r multiplies the SUM of
    # both projections (incl. the h_hidden bias), not only the h projection.
    c = jnp.tanh(r * pre[:, 2 * h_p:3 * h_p])          # candidate hidden

    out_ref[...] = (h_prev + z * (c - h_prev)).astype(out_ref.dtype)


# --------------------------------------------------------------------------
# Wrapper
# --------------------------------------------------------------------------
def gru_cell(x, hidden, fused, *, tile_b=8):
    """x: (B, in_size) f32, hidden: (B, H) f32 or None, fused: fuse_params()."""
    B = x.shape[0]
    in_size, H = fused["in_size"], fused["H"]
    in_p, h_p, k_p = fused["in_p"], fused["h_p"], fused["k_p"]

    if hidden is None:                                  # PyTorch hidden=None path
        hidden = jnp.zeros((B, H), jnp.float32)

    assert tile_b % SUBLANE == 0
    b_p = _round_up(max(B, tile_b), tile_b)

    # Layout plumbing (wrapper side): pack [x | h] into a lane-aligned slab.
    xh = jnp.zeros((b_p, k_p), jnp.float32)
    xh = xh.at[:B, :in_size].set(x)
    xh = xh.at[:B, in_p:in_p + H].set(hidden)

    kernel = functools.partial(gru_fused_kernel, in_p=in_p, h_p=h_p)

    out = pl.pallas_call(
        kernel,
        out_shape=jax.ShapeDtypeStruct((b_p, h_p), jnp.float32),
        grid_spec=pltpu.PrefetchScalarGridSpec(
            num_scalar_prefetch=0,
            grid=(b_p // tile_b,),
            in_specs=[
                # activations: streamed per batch tile
                pl.BlockSpec((tile_b, k_p), lambda i: (i, 0)),
                # fused weight / bias: constant index_map -> VMEM-resident
                pl.BlockSpec((k_p, 3 * h_p), lambda i: (0, 0)),
                pl.BlockSpec((1, 3 * h_p), lambda i: (0, 0)),
            ],
            out_specs=pl.BlockSpec((tile_b, h_p), lambda i: (i, 0)),
        ),
        compiler_params=pltpu.CompilerParams(
            # batch axis is independent -> shard across TensorCores (v7x).
            dimension_semantics=("parallel",),
            # NOTE: at large H, size the fused (Kp, 3*Hp) weight for v7x's
            # 64 MiB VMEM (bf16 + output-axis tiling) before raising limits.
        ),
    )(xh, fused["w"], fused["b"])

    return out[:B, :H]


# --------------------------------------------------------------------------
# Parameters (PyTorch-equivalent init) + one-time fusion transform
# --------------------------------------------------------------------------
def init_params(key, in_size, hidden_size):
    std = 1.0 / math.sqrt(hidden_size)
    keys = jax.random.split(key, 12)
    u = lambda k, shape: jax.random.uniform(k, shape, jnp.float32, -std, std)
    # weights stored as (in_features, out_features) so the math is x @ W + b
    return {
        "wxz": u(keys[0], (in_size, hidden_size)),
        "wxr": u(keys[1], (in_size, hidden_size)),
        "wxh": u(keys[2], (in_size, hidden_size)),
        "whz": u(keys[3], (hidden_size, hidden_size)),
        "whr": u(keys[4], (hidden_size, hidden_size)),
        "whh": u(keys[5], (hidden_size, hidden_size)),
        "bxz": u(keys[6], (1, hidden_size)),
        "bxr": u(keys[7], (1, hidden_size)),
        "bxh": u(keys[8], (1, hidden_size)),
        "bhz": u(keys[9], (1, hidden_size)),
        "bhr": u(keys[10], (1, hidden_size)),
        "bhh": u(keys[11], (1, hidden_size)),
    }


def fuse_params(p, in_size, hidden_size, weight_dtype=jnp.bfloat16):
    """Stack the 6 weights into one padded (Kp, 3*Hp) matrix, pre-sum biases."""
    in_p = _round_up(max(in_size, LANE), LANE)
    h_p = _round_up(max(hidden_size, LANE), LANE)
    k_p = in_p + h_p

    gates = [("wxz", "whz", "bxz", "bhz"),   # z
             ("wxr", "whr", "bxr", "bhr"),   # r
             ("wxh", "whh", "bxh", "bhh")]   # h_cand

    w = jnp.zeros((k_p, 3 * h_p), jnp.float32)
    b = jnp.zeros((1, 3 * h_p), jnp.float32)
    for g, (wx, wh, bx, bh) in enumerate(gates):
        col = g * h_p
        w = w.at[:in_size, col:col + hidden_size].set(p[wx])
        w = w.at[in_p:in_p + hidden_size, col:col + hidden_size].set(p[wh])
        b = b.at[:, col:col + hidden_size].set(p[bx] + p[bh])

    return {"w": w.astype(weight_dtype), "b": b,
            "in_size": in_size, "H": hidden_size,
            "in_p": in_p, "h_p": h_p, "k_p": k_p}


# --------------------------------------------------------------------------
# References
# --------------------------------------------------------------------------
def gru_cell_ref(x, hidden, p):
    """Pure-JAX f32 reference mirroring the PyTorch forward exactly."""
    z = jax.nn.sigmoid(x @ p["wxz"] + p["bxz"] + hidden @ p["whz"] + p["bhz"])
    r = jax.nn.sigmoid(x @ p["wxr"] + p["bxr"] + hidden @ p["whr"] + p["bhr"])
    h = jnp.tanh(r * (x @ p["wxh"] + p["bxh"] + hidden @ p["whh"] + p["bhh"]))
    return z * h + (1.0 - z) * hidden


def gru_cell_ref_fused(x, hidden, fused):
    """Same fused-bf16 math path in plain JAX (isolates kernel machinery)."""
    B = x.shape[0]
    in_size, H = fused["in_size"], fused["H"]
    in_p, h_p, k_p = fused["in_p"], fused["h_p"], fused["k_p"]
    xh = jnp.zeros((B, k_p), jnp.float32)
    xh = xh.at[:, :in_size].set(x).at[:, in_p:in_p + H].set(hidden)
    pre = jnp.dot(xh.astype(fused["w"].dtype), fused["w"],
                  preferred_element_type=jnp.float32) + fused["b"]
    z = jax.nn.sigmoid(pre[:, 0:H])
    r = jax.nn.sigmoid(pre[:, h_p:h_p + H])
    c = jnp.tanh(r * pre[:, 2 * h_p:2 * h_p + H])
    return hidden + z * (c - hidden)


# --------------------------------------------------------------------------
if __name__ == "__main__":
    B, in_size, hidden_size = 2, 4, 32
    key = jax.random.PRNGKey(0)
    k_p, k_x, k_h = jax.random.split(key, 3)

    params = init_params(k_p, in_size, hidden_size)
    fused = fuse_params(params, in_size, hidden_size)

    x = jax.random.normal(k_x, (B, in_size), jnp.float32)

    # hidden=None path (PyTorch default -> zeros)
    hidden0 = jnp.zeros((B, hidden_size), jnp.float32)
    out = jax.block_until_ready(gru_cell(x, None, fused))
    assert out.shape == (B, hidden_size)
    # tight check vs the same fused-bf16 math path
    assert jnp.allclose(out, gru_cell_ref_fused(x, hidden0, fused),
                        atol=1e-3, rtol=1e-3)
    # semantic check vs pure-f32 PyTorch-equivalent reference
    # (tolerance loosened because weights/operands are bf16 on the MXU)
    assert jnp.allclose(out, gru_cell_ref(x, hidden0, params),
                        atol=1e-1, rtol=1e-1)

    # non-zero hidden state
    hidden2 = jax.random.normal(k_h, (B, hidden_size), jnp.float32)
    out2 = jax.block_until_ready(gru_cell(x, hidden2, fused))
    assert jnp.allclose(out2, gru_cell_ref_fused(x, hidden2, fused),
                        atol=1e-3, rtol=1e-3)
    assert jnp.allclose(out2, gru_cell_ref(x, hidden2, params),
                        atol=1e-1, rtol=1e-1)

    print("KERNEL_OK")
</pallas_src>

<mosaic_0001>
module attributes {stable_mosaic.version = 11 : i64} {
  func.func @gru_fused_kernel(%arg0: i32, %arg1: memref<8x256xf32, #tpu.memory_space<vmem>>, %arg2: memref<256x384xbf16, #tpu.memory_space<vmem>>, %arg3: memref<1x384xf32, #tpu.memory_space<vmem>>, %arg4: memref<8x128xf32, #tpu.memory_space<vmem>>) attributes {dimension_semantics = [#tpu.dimension_semantics<parallel>], iteration_bounds = array<i64: 1>, scalar_prefetch = 0 : i64, scratch_operands = 0 : i64, tpu.core_type = #tpu.core_type<tc>, window_params = [{transform_indices = @transform_0, window_bounds = array<i64: 8, 256>}, {pipeline_mode = #tpu.pipeline_mode<synchronous>, transform_indices = @transform_1, window_bounds = array<i64: 256, 384>}, {pipeline_mode = #tpu.pipeline_mode<synchronous>, transform_indices = @transform_2, window_bounds = array<i64: 1, 384>}, {transform_indices = @transform_3, window_bounds = array<i64: 8, 128>}]} {
    %c0 = arith.constant 0 : index
    %c0_0 = arith.constant 0 : index
    %0 = vector.load %arg1[%c0, %c0_0] : memref<8x256xf32, #tpu.memory_space<vmem>>, vector<8x256xf32>
    %1 = vector.extract_strided_slice %0 {offsets = [0, 128], sizes = [8, 128], strides = [1, 1]} : vector<8x256xf32> to vector<8x128xf32>
    %2 = arith.truncf %0 : vector<8x256xf32> to vector<8x256xbf16>
    %c0_1 = arith.constant 0 : index
    %c0_2 = arith.constant 0 : index
    %3 = vector.load %arg2[%c0_1, %c0_2] : memref<256x384xbf16, #tpu.memory_space<vmem>>, vector<256x384xbf16>
    %cst = arith.constant dense<0.000000e+00> : vector<8x384xf32>
    %4 = tpu.matmul %2, %3, %cst {dimension_numbers = #tpu.dot_dimension_numbers<[1], [0], [0], [1], [0, 0, 1, 1], [], []>} : vector<8x256xbf16>, vector<256x384xbf16>, vector<8x384xf32> -> vector<8x384xf32>
    %c0_3 = arith.constant 0 : index
    %c0_4 = arith.constant 0 : index
    %5 = vector.load %arg3[%c0_3, %c0_4] : memref<1x384xf32, #tpu.memory_space<vmem>>, vector<1x384xf32>
    %6 = vector.broadcast %5 : vector<1x384xf32> to vector<8x384xf32>
    %7 = arith.addf %4, %6 : vector<8x384xf32>
    %8 = vector.extract_strided_slice %7 {offsets = [0, 0], sizes = [8, 128], strides = [1, 1]} : vector<8x384xf32> to vector<8x128xf32>
    %9 = arith.negf %8 : vector<8x128xf32>
    %10 = math.exp %9 : vector<8x128xf32>
    %cst_5 = arith.constant 1.000000e+00 : f32
    %11 = vector.broadcast %cst_5 : f32 to vector<8x128xf32>
    %12 = arith.addf %11, %10 : vector<8x128xf32>
    %13 = arith.divf %11, %12 : vector<8x128xf32>
    %14 = vector.extract_strided_slice %7 {offsets = [0, 128], sizes = [8, 128], strides = [1, 1]} : vector<8x384xf32> to vector<8x128xf32>
    %15 = arith.negf %14 : vector<8x128xf32>
    %16 = math.exp %15 : vector<8x128xf32>
    %cst_6 = arith.constant 1.000000e+00 : f32
    %17 = vector.broadcast %cst_6 : f32 to vector<8x128xf32>
    %18 = arith.addf %17, %16 : vector<8x128xf32>
    %19 = arith.divf %17, %18 : vector<8x128xf32>
    %20 = vector.extract_strided_slice %7 {offsets = [0, 256], sizes = [8, 128], strides = [1, 1]} : vector<8x384xf32> to vector<8x128xf32>
    %21 = arith.mulf %19, %20 : vector<8x128xf32>
    %22 = math.tanh %21 : vector<8x128xf32>
    %23 = arith.subf %22, %1 : vector<8x128xf32>
    %24 = arith.mulf %13, %23 : vector<8x128xf32>
    %25 = arith.addf %1, %24 : vector<8x128xf32>
    %c0_7 = arith.constant 0 : index
    %c0_8 = arith.constant 0 : index
    %26 = vector.load %arg4[%c0_7, %c0_8] : memref<8x128xf32, #tpu.memory_space<vmem>>, vector<8x128xf32>
    tpu.vector_store %arg4[%c0_7, %c0_8], %25 {strides = array<i32>} : memref<8x128xf32, #tpu.memory_space<vmem>>, vector<8x128xf32>,
    return
  }
  func.func @transform_0(%arg0: i32) -> (i32, i32) {
    %c0_i32 = arith.constant 0 : i32
    %c0_i32_0 = arith.constant 0 : i32
    return %arg0, %c0_i32 : i32, i32
  }
  func.func @transform_1(%arg0: i32) -> (i32, i32) {
    %c0_i32 = arith.constant 0 : i32
    %c0_i32_0 = arith.constant 0 : i32
    %c0_i32_1 = arith.constant 0 : i32
    return %c0_i32, %c0_i32_0 : i32, i32
  }
  func.func @transform_2(%arg0: i32) -> (i32, i32) {
    %c0_i32 = arith.constant 0 : i32
    %c0_i32_0 = arith.constant 0 : i32
    %c0_i32_1 = arith.constant 0 : i32
    return %c0_i32, %c0_i32_0 : i32, i32
  }
  func.func @transform_3(%arg0: i32) -> (i32, i32) {
    %c0_i32 = arith.constant 0 : i32
    %c0_i32_0 = arith.constant 0 : i32
    return %arg0, %c0_i32 : i32, i32
  }
}

</mosaic_0001>

<llo_original>
// kernel: tpu_custom_call.1
$region0: #{tpu_custom_call.1}
  #allocation0 [shape = 'u32[]', space=smem, size = 0x4, offset = 0x4, fixed_abs, tag = 'smem constant byte address 0x4 - core index']
  #allocation1 [shape = 'u32[72,128]{1,0:T(1,128)}', space=vmem, size = 0x9000, scoped, tag = 'internal scratch']
  %s0 = inlined_call_operand.hbm [shape: f32[8,256], index: 0, kind: input, shape index: {}]
  %s1 = inlined_call_operand.hbm [shape: bf16[256,384], index: 1, kind: input, shape index: {}]
  %s2 = inlined_call_operand.hbm [shape: f32[1,384], index: 2, kind: input, shape index: {}]
  %s3 = inlined_call_operand.hbm [shape: f32[8,128], index: 3, kind: output, shape index: {}]
  %s4 = sld [smem:[#allocation0]]
  $region34: #{tpu_custom_call.1} parent=0
    _
  %s6 = ssub.s32 1, %s4
  %s7 = scalar_select 0, %s6, %s4
  $region1: #{tpu_custom_call.1} parent=0
    #allocation2 [shape = 'u8[8192]{0}', space=vmem, size = 0x2000, scoped, tag = 'input window, operand 0, single buffered']
    #allocation3 [shape = 's32[1]{0}', space=sflag, size = 0x4, scoped, tag = 'scoped memory for tpu_custom_call.1']
    #allocation4 [shape = 's32[1]{0}', space=sflag, size = 0x4, scoped, tag = 'scoped memory for tpu_custom_call.1']
    #allocation5 [shape = 'u8[196608]{0}', space=vmem, size = 0x30000, scoped, tag = 'input window, operand 1, single buffered']
    #allocation6 [shape = 's32[1]{0}', space=sflag, size = 0x4, scoped, tag = 'scoped memory for tpu_custom_call.1']
    #allocation7 [shape = 'u8[1536]{0}', space=vmem, size = 0x800, scoped, tag = 'input window, operand 2, single buffered']
    #allocation8 [shape = 'u8[4096]{0}', space=vmem, size = 0x1000, scoped, tag = 'output window, operand 0, single buffered']
    %8 = vsyncpa [#allocation3], 0
    %9 = vsyncpa [#allocation6], 0
    %10 = vsyncpa [#allocation4], 0
    // Predicated region
    $region2: #{tpu_custom_call.1} parent=1 // pred_check
      _
    $region3: #{tpu_custom_call.1} parent=1 // pred_check_branch
      %12 = sbr.rel (0) target = $region5
    $region4: #{tpu_custom_call.1} parent=1 // pred_region
      %14 = vsyncadd [#allocation3], 0
      %s16 = sshll.u32 %s0, 4
      %s17 = int_to_ptr.hbm [resolvable:$true] %s16
      %s18 = sshll.u32 [#allocation2], 4
      %s19 = int_to_ptr.vmem [resolvable:$true] %s18
      %21 = dma.hbm_to_vmem [thread:$0]  %s17, 256, %s19, [#allocation3]
    $region5: #{tpu_custom_call.1} parent=1 // pred_fallthru
      _
    // Predicated region
    $region6: #{tpu_custom_call.1} parent=1 // pred_check
      _
    $region7: #{tpu_custom_call.1} parent=1 // pred_check_branch
      %23 = sbr.rel (0) target = $region9
    $region8: #{tpu_custom_call.1} parent=1 // pred_region
      %25 = vsyncadd [#allocation6], 0
      %s26 = sshll.u32 %s1, 4
      %s27 = int_to_ptr.hbm [resolvable:$true] %s26
      %s28 = sshll.u32 [#allocation5], 4
      %s29 = int_to_ptr.vmem [resolvable:$true] %s28
      %34 = dma.hbm_to_vmem [thread:$0]  %s27, 6144, %s29, [#allocation6], 192, 192, 12
    $region9: #{tpu_custom_call.1} parent=1 // pred_fallthru
      _
    // Predicated region
    $region10: #{tpu_custom_call.1} parent=1 // pred_check
      _
    $region11: #{tpu_custom_call.1} parent=1 // pred_check_branch
      %36 = sbr.rel (0) target = $region13
    $region12: #{tpu_custom_call.1} parent=1 // pred_region
      %38 = vsyncadd [#allocation6], 0
      %s40 = sshll.u32 %s2, 4
      %s41 = int_to_ptr.hbm [resolvable:$true] %s40
      %s42 = sshll.u32 [#allocation7], 4
      %s43 = int_to_ptr.vmem [resolvable:$true] %s42
      %45 = dma.hbm_to_vmem [thread:$0]  %s41, 48, %s43, [#allocation6]
    $region13: #{tpu_custom_call.1} parent=1 // pred_fallthru
      _
    // Predicated region
    $region14: #{tpu_custom_call.1} parent=1 // pred_check
      _
    $region15: #{tpu_custom_call.1} parent=1 // pred_check_branch
      %47 = sbr.rel (0) target = $region17
    $region16: #{tpu_custom_call.1} parent=1 // pred_region
      %49 = dma.done [#allocation3], 256
    $region17: #{tpu_custom_call.1} parent=1 // pred_fallthru
      _
    // Predicated region
    $region18: #{tpu_custom_call.1} parent=1 // pred_check
      _
    $region19: #{tpu_custom_call.1} parent=1 // pred_check_branch
      %51 = sbr.rel (0) target = $region21
    $region20: #{tpu_custom_call.1} parent=1 // pred_region
      %53 = dma.done [#allocation6], 6144
    $region21: #{tpu_custom_call.1} parent=1 // pred_fallthru
      _
    // Predicated region
    $region22: #{tpu_custom_call.1} parent=1 // pred_check
      _
    $region23: #{tpu_custom_call.1} parent=1 // pred_check_branch
      %55 = sbr.rel (0) target = $region25
    $region24: #{tpu_custom_call.1} parent=1 // pred_region
      %57 = dma.done [#allocation6], 48
    $region25: #{tpu_custom_call.1} parent=1 // pred_fallthru
      _
    %v58 = vld [vmem:[#allocation2] sm:$0xff]
    %v59 = vld [vmem:[#allocation2 + $0x8] sm:$0xff]
    %v60 = vpack.c.bf16 %v58, %v58
    %v61 = vpack.c.bf16 %v59, %v59
    %v62 = vld [vmem:[#allocation5] sm:$0xff]
    %v63 = vld [vmem:[#allocation5 + $0x8] sm:$0xf]
    %v64 = vld [vmem:[#allocation5 + $0xc] sm:$0xff]
    %v65 = vld [vmem:[#allocation5 + $0x14] sm:$0xf]
    %v66 = vld [vmem:[#allocation5 + $0x18] sm:$0xff]
    %v67 = vld [vmem:[#allocation5 + $0x20] sm:$0xf]
    %v68 = vld [vmem:[#allocation5 + $0x24] sm:$0xff]
    %v69 = vld [vmem:[#allocation5 + $0x2c] sm:$0xf]
    %v70 = vld [vmem:[#allocation5 + $0x30] sm:$0xff]
    %v71 = vld [vmem:[#allocation5 + $0x38] sm:$0xf]
    %v72 = vld [vmem:[#allocation5 + $0x3c] sm:$0xff]
    %v73 = vld [vmem:[#allocation5 + $0x44] sm:$0xf]
    %v74 = vld [vmem:[#allocation5 + $0x48] sm:$0xff]
    %v75 = vld [vmem:[#allocation5 + $0x50] sm:$0xf]
    %v76 = vld [vmem:[#allocation5 + $0x54] sm:$0xff]
    %v77 = vld [vmem:[#allocation5 + $0x5c] sm:$0xf]
    %v78 = vld [vmem:[#allocation5 + $0x60] sm:$0xff]
    %v79 = vld [vmem:[#allocation5 + $0x68] sm:$0xf]
    %v80 = vld [vmem:[#allocation5 + $0x6c] sm:$0xff]
    %v81 = vld [vmem:[#allocation5 + $0x74] sm:$0xf]
    %v82 = vld [vmem:[#allocation5 + $0x78] sm:$0xff]
    %v83 = vld [vmem:[#allocation5 + $0x80] sm:$0xf]
    %v84 = vld [vmem:[#allocation5 + $0x84] sm:$0xff]
    %v85 = vld [vmem:[#allocation5 + $0x8c] sm:$0xf]
    %v86 = vld [vmem:[#allocation5 + $0x90] sm:$0xff]
    %v87 = vld [vmem:[#allocation5 + $0x98] sm:$0xf]
    %v88 = vld [vmem:[#allocation5 + $0x9c] sm:$0xff]
    %v89 = vld [vmem:[#allocation5 + $0xa4] sm:$0xf]
    %v90 = vld [vmem:[#allocation5 + $0xa8] sm:$0xff]
    %v91 = vld [vmem:[#allocation5 + $0xb0] sm:$0xf]
    %v92 = vld [vmem:[#allocation5 + $0xb4] sm:$0xff]
    %v93 = vld [vmem:[#allocation5 + $0xbc] sm:$0xf]
    %v94 = vld [vmem:[#allocation5 + $0xc0] sm:$0xff]
    %v95 = vld [vmem:[#allocation5 + $0xc8] sm:$0xf]
    %v96 = vld [vmem:[#allocation5 + $0xcc] sm:$0xff]
    %v97 = vld [vmem:[#allocation5 + $0xd4] sm:$0xf]
    %v98 = vld [vmem:[#allocation5 + $0xd8] sm:$0xff]
    %v99 = vld [vmem:[#allocation5 + $0xe0] sm:$0xf]
    %v100 = vld [vmem:[#allocation5 + $0xe4] sm:$0xff]
    %v101 = vld [vmem:[#allocation5 + $0xec] sm:$0xf]
    %v102 = vld [vmem:[#allocation5 + $0xf0] sm:$0xff]
    %v103 = vld [vmem:[#allocation5 + $0xf8] sm:$0xf]
    %v104 = vld [vmem:[#allocation5 + $0xfc] sm:$0xff]
    %v105 = vld [vmem:[#allocation5 + $0x104] sm:$0xf]
    %v106 = vld [vmem:[#allocation5 + $0x108] sm:$0xff]
    %v107 = vld [vmem:[#allocation5 + $0x110] sm:$0xf]
    %v108 = vld [vmem:[#allocation5 + $0x114] sm:$0xff]
    %v109 = vld [vmem:[#allocation5 + $0x11c] sm:$0xf]
    %v110 = vld [vmem:[#allocation5 + $0x120] sm:$0xff]
    %v111 = vld [vmem:[#allocation5 + $0x128] sm:$0xf]
    %v112 = vld [vmem:[#allocation5 + $0x12c] sm:$0xff]
    %v113 = vld [vmem:[#allocation5 + $0x134] sm:$0xf]
    %v114 = vld [vmem:[#allocation5 + $0x138] sm:$0xff]
    %v115 = vld [vmem:[#allocation5 + $0x140] sm:$0xf]
    %v116 = vld [vmem:[#allocation5 + $0x144] sm:$0xff]
    %v117 = vld [vmem:[#allocation5 + $0x14c] sm:$0xf]
    %v118 = vld [vmem:[#allocation5 + $0x150] sm:$0xff]
    %v119 = vld [vmem:[#allocation5 + $0x158] sm:$0xf]
    %v120 = vld [vmem:[#allocation5 + $0x15c] sm:$0xff]
    %v121 = vld [vmem:[#allocation5 + $0x164] sm:$0xf]
    %v122 = vld [vmem:[#allocation5 + $0x168] sm:$0xff]
    %v123 = vld [vmem:[#allocation5 + $0x170] sm:$0xf]
    %v124 = vld [vmem:[#allocation5 + $0x174] sm:$0xff]
    %v125 = vld [vmem:[#allocation5 + $0x17c] sm:$0xf]
    %v126 = vld [vmem:[#allocation7] sm:$0x7]
    %v128 = vperm.slane %v126, 0
    %v129 = vperm.slane %v126, 1
    %v130 = vperm.slane %v126, 2
    %v198 = vunpack.c.l.b16 %v62
    %v199 = vunpack.c.h.b16 %v62
    %v200 = vunpack.c.l.b16 %v63
    %v201 = vunpack.c.l.b16 %v64
    %v202 = vunpack.c.h.b16 %v64
    %v203 = vunpack.c.l.b16 %v65
    %v204 = vunpack.c.l.b16 %v66
    %v205 = vunpack.c.h.b16 %v66
    %v206 = vunpack.c.l.b16 %v67
    %v207 = vunpack.c.l.b16 %v68
    %v208 = vunpack.c.h.b16 %v68
    %v209 = vunpack.c.l.b16 %v69
    %v210 = vunpack.c.l.b16 %v70
    %v211 = vunpack.c.h.b16 %v70
    %v212 = vunpack.c.l.b16 %v71
    %v213 = vunpack.c.l.b16 %v72
    %v214 = vunpack.c.h.b16 %v72
    %v215 = vunpack.c.l.b16 %v73
    %v216 = vunpack.c.l.b16 %v74
    %v217 = vunpack.c.h.b16 %v74
    %v218 = vunpack.c.l.b16 %v75
    %v219 = vunpack.c.l.b16 %v76
    %v220 = vunpack.c.h.b16 %v76
    %v221 = vunpack.c.l.b16 %v77
    %v222 = vunpack.c.l.b16 %v78
    %v223 = vunpack.c.h.b16 %v78
    %v224 = vunpack.c.l.b16 %v79
    %v225 = vunpack.c.l.b16 %v80
    %v226 = vunpack.c.h.b16 %v80
    %v227 = vunpack.c.l.b16 %v81
    %v228 = vunpack.c.l.b16 %v82
    %v229 = vunpack.c.h.b16 %v82
    %v230 = vunpack.c.l.b16 %v83
    %v231 = vunpack.c.l.b16 %v84
    %v232 = vunpack.c.h.b16 %v84
    %v233 = vunpack.c.l.b16 %v85
    %v234 = vunpack.c.l.b16 %v86
    %v235 = vunpack.c.h.b16 %v86
    %v236 = vunpack.c.l.b16 %v87
    %v237 = vunpack.c.l.b16 %v88
    %v238 = vunpack.c.h.b16 %v88
    %v239 = vunpack.c.l.b16 %v89
    %v240 = vunpack.c.l.b16 %v90
    %v241 = vunpack.c.h.b16 %v90
    %v242 = vunpack.c.l.b16 %v91
    %v243 = vunpack.c.l.b16 %v92
    %v244 = vunpack.c.h.b16 %v92
    %v245 = vunpack.c.l.b16 %v93
    %v246 = vunpack.c.l.b16 %v94
    %v247 = vunpack.c.h.b16 %v94
    %v248 = vunpack.c.l.b16 %v95
    %v249 = vunpack.c.l.b16 %v96
    %v250 = vunpack.c.h.b16 %v96
    %v251 = vunpack.c.l.b16 %v97
    %v252 = vunpack.c.l.b16 %v98
    %v253 = vunpack.c.h.b16 %v98
    %v254 = vunpack.c.l.b16 %v99
    %v255 = vunpack.c.l.b16 %v100
    %v256 = vunpack.c.h.b16 %v100
    %v257 = vunpack.c.l.b16 %v101
    %v258 = vunpack.c.l.b16 %v102
    %v259 = vunpack.c.h.b16 %v102
    %v260 = vunpack.c.l.b16 %v103
    %v261 = vunpack.c.l.b16 %v104
    %v262 = vunpack.c.h.b16 %v104
    %v263 = vunpack.c.l.b16 %v105
    %v264 = vunpack.c.l.b16 %v106
    %v265 = vunpack.c.h.b16 %v106
    %v266 = vunpack.c.l.b16 %v107
    %v267 = vunpack.c.l.b16 %v108
    %v268 = vunpack.c.h.b16 %v108
    %v269 = vunpack.c.l.b16 %v109
    %v270 = vunpack.c.l.b16 %v110
    %v271 = vunpack.c.h.b16 %v110
    %v272 = vunpack.c.l.b16 %v111
    %v273 = vunpack.c.l.b16 %v112
    %v274 = vunpack.c.h.b16 %v112
    %v275 = vunpack.c.l.b16 %v113
    %v276 = vunpack.c.l.b16 %v114
    %v277 = vunpack.c.h.b16 %v114
    %v278 = vunpack.c.l.b16 %v115
    %v279 = vunpack.c.l.b16 %v116
    %v280 = vunpack.c.h.b16 %v116
    %v281 = vunpack.c.l.b16 %v117
    %v282 = vunpack.c.l.b16 %v118
    %v283 = vunpack.c.h.b16 %v118
    %v284 = vunpack.c.l.b16 %v119
    %v285 = vunpack.c.l.b16 %v120
    %v286 = vunpack.c.h.b16 %v120
    %v287 = vunpack.c.l.b16 %v121
    %v288 = vunpack.c.l.b16 %v122
    %v289 = vunpack.c.h.b16 %v122
    %v290 = vunpack.c.l.b16 %v123
    %v291 = vunpack.c.l.b16 %v124
    %v292 = vunpack.c.h.b16 %v124
    %v293 = vunpack.c.l.b16 %v125
    %v294 = vpack.c.b16 %v201, %v198
    %v295 = vpack.c.b16 %v202, %v199
    %v296 = vpack.c.b16 %v203, %v200
    %v297 = vpack.c.b16 %v207, %v204
    %v298 = vpack.c.b16 %v208, %v205
    %v299 = vpack.c.b16 %v209, %v206
    %v300 = vpack.c.b16 %v213, %v210
    %v301 = vpack.c.b16 %v214, %v211
    %v302 = vpack.c.b16 %v215, %v212
    %v303 = vpack.c.b16 %v219, %v216
    %v304 = vpack.c.b16 %v220, %v217
    %v305 = vpack.c.b16 %v221, %v218
    %v306 = vpack.c.b16 %v225, %v222
    %v307 = vpack.c.b16 %v226, %v223
    %v308 = vpack.c.b16 %v227, %v224
    %v309 = vpack.c.b16 %v231, %v228
    %v310 = vpack.c.b16 %v232, %v229
    %v311 = vpack.c.b16 %v233, %v230
    %v312 = vpack.c.b16 %v237, %v234
    %v313 = vpack.c.b16 %v238, %v235
    %v314 = vpack.c.b16 %v239, %v236
    %v315 = vpack.c.b16 %v243, %v240
    %v316 = vpack.c.b16 %v244, %v241
    %v317 = vpack.c.b16 %v245, %v242
    %v318 = vpack.c.b16 %v249, %v246
    %v319 = vpack.c.b16 %v250, %v247
    %v320 = vpack.c.b16 %v251, %v248
    %v321 = vpack.c.b16 %v255, %v252
    %v322 = vpack.c.b16 %v256, %v253
    %v323 = vpack.c.b16 %v257, %v254
    %v324 = vpack.c.b16 %v261, %v258
    %v325 = vpack.c.b16 %v262, %v259
    %v326 = vpack.c.b16 %v263, %v260
    %v327 = vpack.c.b16 %v267, %v264
    %v328 = vpack.c.b16 %v268, %v265
    %v329 = vpack.c.b16 %v269, %v266
    %v330 = vpack.c.b16 %v273, %v270
    %v331 = vpack.c.b16 %v274, %v271
    %v332 = vpack.c.b16 %v275, %v272
    %v333 = vpack.c.b16 %v279, %v276
    %v334 = vpack.c.b16 %v280, %v277
    %v335 = vpack.c.b16 %v281, %v278
    %v336 = vpack.c.b16 %v285, %v282
    %v337 = vpack.c.b16 %v286, %v283
    %v338 = vpack.c.b16 %v287, %v284
    %v339 = vpack.c.b16 %v291, %v288
    %v340 = vpack.c.b16 %v292, %v289
    %v341 = vpack.c.b16 %v293, %v290
    %390 = vmatpush.bf16.msra.mxu0 %v315
    %391 = vmatpush.bf16.msra.mxu0 %v312
    %392 = vmatpush.bf16.msra.mxu0 %v309
    %393 = vmatpush.bf16.msra.mxu0 %v306
    %394 = vmatpush.bf16.msra.mxu0 %v303
    %395 = vmatpush.bf16.msra.mxu0 %v300
    %396 = vmatpush.bf16.msra.mxu0 %v297
    %397 = vmatpush.bf16.msra.mxu0 %v294
    %398 = vmatmul.bf16.gmra.mxu0 %v60
    %v399 = vpop.f32.mrf.mxu0
    %v400 = vadd.f32 %v128, %v399
    %v401 = vpop.f32.mrf.mxu0
    %402 = vdwg.mxu0
    %403 = vmatpush.bf16.msra.mxu0 %v339
    %404 = vmatpush.bf16.msra.mxu0 %v336
    %405 = vmatpush.bf16.msra.mxu0 %v333
    %406 = vmatpush.bf16.msra.mxu0 %v330
    %407 = vmatpush.bf16.msra.mxu0 %v327
    %408 = vmatpush.bf16.msra.mxu0 %v324
    %409 = vmatpush.bf16.msra.mxu0 %v321
    %410 = vmatpush.bf16.msra.mxu0 %v318
    %411 = vmatmul.bf16.gmra.mxu0 %v61
    %v412 = vpop.f32.mrf.mxu0
    %v413 = vadd.f32 %v400, %v412
    %v414 = vpop.f32.mrf.mxu0
    %415 = vdwg.mxu0
    %416 = vmatpush.bf16.msra.mxu0 %v316
    %417 = vmatpush.bf16.msra.mxu0 %v313
    %418 = vmatpush.bf16.msra.mxu0 %v310
    %419 = vmatpush.bf16.msra.mxu0 %v307
    %420 = vmatpush.bf16.msra.mxu0 %v304
    %421 = vmatpush.bf16.msra.mxu0 %v301
    %422 = vmatpush.bf16.msra.mxu0 %v298
    %423 = vmatpush.bf16.msra.mxu0 %v295
    %424 = vmatmul.bf16.gmra.mxu0 %v60
    %v425 = vpop.f32.mrf.mxu0
    %v426 = vadd.f32 %v129, %v425
    %v427 = vpop.f32.mrf.mxu0
    %428 = vdwg.mxu0
    %429 = vmatpush.bf16.msra.mxu0 %v340
    %430 = vmatpush.bf16.msra.mxu0 %v337
    %431 = vmatpush.bf16.msra.mxu0 %v334
    %432 = vmatpush.bf16.msra.mxu0 %v331
    %433 = vmatpush.bf16.msra.mxu0 %v328
    %434 = vmatpush.bf16.msra.mxu0 %v325
    %435 = vmatpush.bf16.msra.mxu0 %v322
    %436 = vmatpush.bf16.msra.mxu0 %v319
    %437 = vmatmul.bf16.gmra.mxu0 %v61
    %v438 = vpop.f32.mrf.mxu0
    %v439 = vadd.f32 %v426, %v438
    %v440 = vpop.f32.mrf.mxu0
    %441 = vdwg.mxu0
    %442 = vmatpush.bf16.msra.mxu0 %v317
    %443 = vmatpush.bf16.msra.mxu0 %v314
    %444 = vmatpush.bf16.msra.mxu0 %v311
    %445 = vmatpush.bf16.msra.mxu0 %v308
    %446 = vmatpush.bf16.msra.mxu0 %v305
    %447 = vmatpush.bf16.msra.mxu0 %v302
    %448 = vmatpush.bf16.msra.mxu0 %v299
    %449 = vmatpush.bf16.msra.mxu0 %v296
    %450 = vmatmul.bf16.gmra.mxu0 %v60
    %v451 = vpop.f32.mrf.mxu0
    %v452 = vadd.f32 %v130, %v451
    %v453 = vpop.f32.mrf.mxu0
    %454 = vdwg.mxu0
    %455 = vmatpush.bf16.msra.mxu0 %v341
    %456 = vmatpush.bf16.msra.mxu0 %v338
    %457 = vmatpush.bf16.msra.mxu0 %v335
    %458 = vmatpush.bf16.msra.mxu0 %v332
    %459 = vmatpush.bf16.msra.mxu0 %v329
    %460 = vmatpush.bf16.msra.mxu0 %v326
    %461 = vmatpush.bf16.msra.mxu0 %v323
    %462 = vmatpush.bf16.msra.mxu0 %v320
    %463 = vmatmul.bf16.gmra.mxu0 %v61
    %v464 = vpop.f32.mrf.mxu0
    %v465 = vadd.f32 %v452, %v464
    %v466 = vpop.f32.mrf.mxu0
    %467 = vdwg.mxu0
    %v468 = vxor.u32 %v413, 2147483648
    %v469 = vmul.f32 %v468, 1.442695
    %v470 = vpow.pop %v469
    %v471 = vadd.f32 %v470, 1.0
    %v472 = vrcp.pop %v471
    %v473 = vmul.f32 %v471, %v472
    %v474 = vsub.f32 1.0, %v473
    %v475 = vmul.f32 %v472, %v474
    %v476 = vadd.f32 %v472, %v475
    %vm477 = vweird.f32 %v471
    %vm478 = vweird.f32 %v472
    %vm479 = vmor %vm477, %vm478
    %v480 = vsel %vm479, %v472, %v476
    %v481 = vand.u32 2147483647, %v471
    %vm482 = vcmp.eq.f32.partialorder %v481, 8.507059e+37
    %v483 = vand.u32 %v471, 2147483648
    %v484 = vor.u32 1.1754944e-38, %v483
    %v485 = vsel %vm482, %v484, %v480
    %v486 = vmul.f32 1.0, %v485
    %v487 = vxor.u32 %v439, 2147483648
    %v488 = vmul.f32 %v487, 1.442695
    %v489 = vpow.pop %v488
    %v490 = vadd.f32 %v489, 1.0
    %v491 = vrcp.pop %v490
    %v492 = vmul.f32 %v490, %v491
    %v493 = vsub.f32 1.0, %v492
    %v494 = vmul.f32 %v491, %v493
    %v495 = vadd.f32 %v491, %v494
    %vm496 = vweird.f32 %v490
    %vm497 = vweird.f32 %v491
    %vm498 = vmor %vm496, %vm497
    %v499 = vsel %vm498, %v491, %v495
    %v500 = vand.u32 2147483647, %v490
    %vm501 = vcmp.eq.f32.partialorder %v500, 8.507059e+37
    %v502 = vand.u32 %v490, 2147483648
    %v503 = vor.u32 1.1754944e-38, %v502
    %v504 = vsel %vm501, %v503, %v499
    %v505 = vmul.f32 1.0, %v504
    %v506 = vmul.f32 %v505, %v465
    %v507 = vtanh.pop %v506
    %v508 = vsub.f32 %v507, %v59
    %v509 = vmul.f32 %v486, %v508
    %v510 = vadd.f32 %v59, %v509
    %511 = vst [vmem:[#allocation8] sm:$0xff] %v510
    // Predicated region
    $region26: #{tpu_custom_call.1} parent=1 // pred_check
      _
    $region27: #{tpu_custom_call.1} parent=1 // pred_check_branch
      %513 = sbr.rel (0) target = $region29
    $region28: #{tpu_custom_call.1} parent=1 // pred_region
      %515 = vsyncadd [#allocation4], 0
      %s517 = sshll.u32 [#allocation8], 4
      %s518 = int_to_ptr.vmem [resolvable:$true] %s517
      %s519 = sshll.u32 %s3, 4
      %s520 = int_to_ptr.hbm [resolvable:$true] %s519
      %522 = dma.vmem_to_hbm [thread:$0]  %s518, 128, %s520, [#allocation4]
    $region29: #{tpu_custom_call.1} parent=1 // pred_fallthru
      _
    // Predicated region
    $region30: #{tpu_custom_call.1} parent=1 // pred_check
      _
    $region31: #{tpu_custom_call.1} parent=1 // pred_check_branch
      %524 = sbr.rel (0) target = $region33
    $region32: #{tpu_custom_call.1} parent=1 // pred_region
      %526 = dma.done [#allocation4], 128
    $region33: #{tpu_custom_call.1} parent=1 // pred_fallthru
      _
    %527 = vsyncpa [#allocation3], 1
    %528 = vsyncpa [#allocation6], 1
    %529 = vsyncpa [#allocation4], 1

</llo_original>
